<compile_context>
chip_gen: v7x
topology: tpu7x:2x2x1
jax: 0.10.0
libtpu: 0.0.40
codegen_flags: <defaults>
</compile_context>

<pallas_src>
import functools
import math

import jax
import jax.numpy as jnp
from jax.experimental import pallas as pl
from jax.experimental.pallas import tpu as pltpu

N_EMBD = 384          # n_embd from the module
HEAD_SIZE = 64        # head_size passed to Head.__init__
BLOCK_SIZE = 128      # tril buffer size in the module (only [:T, :T] is used)


def head_kernel(x_ref, w_ref, o_ref, *, head_size, approx_recip):
    """One grid step: causal single-head attention over a (BB, T, C) block.

    x_ref: (BB, T, C) activations in their stored dtype (f32 straight from
           HBM); cast to the MXU compute dtype here, not in a wrapper pass.
    w_ref: (C, 3H) fused [q | k | v] weight, already in the compute dtype,
           with 1/sqrt(H) folded into the q columns.
    o_ref: (BB, T, H) output block.
    """
    BB, T, C = x_ref.shape
    H = head_size
    cdt = w_ref.dtype  # MXU compute dtype (bf16 production / f32 check path)

    # Fused QKV projection: one (BB*T, C) @ (C, 3H) MXU matmul, f32 accum.
    x2d = x_ref[...].reshape(BB * T, C).astype(cdt)
    qkv = jnp.dot(x2d, w_ref[...], preferred_element_type=jnp.float32)
    qkv = qkv.reshape(BB, T, 3 * H)

    # 1/sqrt(H) is already folded into the q columns of w_ref.
    q = qkv[:, :, 0:H].astype(cdt)            # (BB, T, H)
    k = qkv[:, :, H:2 * H].astype(cdt)        # (BB, T, H)
    v = qkv[:, :, 2 * H:3 * H].astype(cdt)    # (BB, T, H)

    # wei = q @ k^T: contract over H directly (no explicit transpose).
    wei = jax.lax.dot_general(
        q, k,
        dimension_numbers=(((2,), (2,)), ((0,), (0,))),
        preferred_element_type=jnp.float32)    # (BB, T, T) f32

    # Causal mask (tril[:T, :T]) from a single (T, T) comparison, broadcast
    # over BB by jnp.where (avoids two (BB, T, T) int32 iota temporaries).
    row = jax.lax.broadcasted_iota(jnp.int32, (T, T), 0)
    col = jax.lax.broadcasted_iota(jnp.int32, (T, T), 1)
    causal = (col <= row)[None, :, :]          # (1, T, T) bool
    wei = jnp.where(causal, wei, -jnp.inf)

    # Numerically stable softmax along the last axis; denominator reciprocal
    # on the EUP slot (approx) for the bf16 production path.
    wei = jnp.exp(wei - jnp.max(wei, axis=-1, keepdims=True))
    denom = jnp.sum(wei, axis=-1, keepdims=True)
    wei = wei * pl.reciprocal(denom, approx=approx_recip)

    # dropout(p=0.15) in eval mode == identity.
    # TODO(synk): training-mode dropout with on-chip PRNG (pltpu.prng_*).

    out = jax.lax.dot_general(
        wei.astype(cdt), v,
        dimension_numbers=(((2,), (1,)), ((0,), (0,))),
        preferred_element_type=jnp.float32)    # (BB, T, H)

    # TODO(synk): H=64 output is lane-sparse (masked vst); a lane-dense output
    # needs either multi-head fusion (interface change) or an in-kernel
    # relayout to a (BB, T*H) slab -- must be measured before adopting since
    # the relayout can eat the win.
    o_ref[...] = out.astype(o_ref.dtype)


def make_qkv_weight(w_key, w_query, w_value, compute_dtype=jnp.bfloat16):
    """Fuse [q | k | v] into one (C, 3H) weight, fold 1/sqrt(H) into q, cast.

    Precompute once and reuse across calls via `head_forward_fused` so the
    concatenate/cast is not rebuilt on every invocation.
    """
    H = w_key.shape[1]
    scale = 1.0 / math.sqrt(H)
    return jnp.concatenate(
        [w_query * scale, w_key, w_value], axis=1).astype(compute_dtype)


def head_forward_fused(x, w_qkv, *, block_batch=16, min_grid_steps=2,
                       out_dtype=None):
    """x: (B, T, C) in its stored dtype; w_qkv: (C, 3H) from make_qkv_weight."""
    B, T, C = x.shape
    H = w_qkv.shape[1] // 3
    assert T <= BLOCK_SIZE, "sequence length must be <= block_size (tril buffer)"
    out_dtype = x.dtype if out_dtype is None else out_dtype

    # Batch elements per grid step: big enough to amortize per-step overhead
    # and keep M = BB*T large for the MXU, but keep >= min_grid_steps grid
    # steps so the "parallel" axis can shard across v7x's two TensorCores.
    BB = min(block_batch, B)
    if B >= min_grid_steps:
        BB = min(BB, B // min_grid_steps)
    BB = max(BB, 1)
    while B % BB != 0:           # fall back to a divisor of B (perf-only)
        BB -= 1
    grid = (B // BB,)

    kernel = functools.partial(
        head_kernel, head_size=H,
        approx_recip=(w_qkv.dtype != jnp.float32))

    return pl.pallas_call(
        kernel,
        out_shape=jax.ShapeDtypeStruct((B, T, H), out_dtype),
        grid_spec=pltpu.PrefetchScalarGridSpec(
            num_scalar_prefetch=0,
            grid=grid,
            in_specs=[
                pl.BlockSpec((BB, T, C), lambda b: (b, 0, 0)),
                pl.BlockSpec((C, 3 * H), lambda b: (0, 0)),
            ],
            out_specs=pl.BlockSpec((BB, T, H), lambda b: (b, 0, 0)),
        ),
        compiler_params=pltpu.CompilerParams(
            dimension_semantics=("parallel",),
        ),
    )(x, w_qkv)


def head_forward(x, w_key, w_query, w_value, *, block_batch=16,
                 compute_dtype=jnp.bfloat16, out_dtype=None):
    """Convenience wrapper: builds the fused weight then calls the kernel."""
    w_qkv = make_qkv_weight(w_key, w_query, w_value, compute_dtype)
    return head_forward_fused(x, w_qkv, block_batch=block_batch,
                              out_dtype=out_dtype)


def reference_forward(x, w_key, w_query, w_value):
    """Pure-JAX reference matching the PyTorch forward (eval mode)."""
    k = x @ w_key
    q = x @ w_query
    v = x @ w_value
    wei = (q @ jnp.swapaxes(k, -2, -1)) * (k.shape[-1] ** -0.5)
    T = x.shape[1]
    mask = jnp.tril(jnp.ones((T, T), dtype=bool))
    wei = jnp.where(mask, wei, -jnp.inf)
    wei = jax.nn.softmax(wei, axis=-1)
    return wei @ v


if __name__ == "__main__":
    key = jax.random.PRNGKey(0)
    kx, kk, kq, kv, kx2 = jax.random.split(key, 5)

    # Deterministic init mimicking nn.Linear(n_embd, head_size, bias=False):
    # uniform(-1/sqrt(n_embd), 1/sqrt(n_embd)), stored as (C, H) = W.T
    bound = 1.0 / math.sqrt(N_EMBD)
    w_key = jax.random.uniform(kk, (N_EMBD, HEAD_SIZE), jnp.float32, -bound, bound)
    w_query = jax.random.uniform(kq, (N_EMBD, HEAD_SIZE), jnp.float32, -bound, bound)
    w_value = jax.random.uniform(kv, (N_EMBD, HEAD_SIZE), jnp.float32, -bound, bound)

    # --- small shape: B=2, T=16 (C = n_embd = 384, head_size = 64) ---
    B, T = 2, 16
    x = jax.random.normal(kx, (B, T, N_EMBD), dtype=jnp.float32)
    ref = reference_forward(x, w_key, w_query, w_value)

    # f32 compute path: exact module semantics (tight check).
    out_f32 = head_forward(x, w_key, w_query, w_value, compute_dtype=jnp.float32)
    jax.block_until_ready(out_f32)
    assert out_f32.shape == (B, T, HEAD_SIZE)
    assert jnp.allclose(out_f32, ref, atol=1e-4, rtol=1e-4), "f32 mismatch vs reference"

    # bf16 MXU path (default / production): looser tolerance for bf16 operands.
    out_bf16 = head_forward(x, w_key, w_query, w_value)
    jax.block_until_ready(out_bf16)
    assert out_bf16.shape == (B, T, HEAD_SIZE)
    assert jnp.allclose(out_bf16, ref, atol=2e-2, rtol=2e-2), "bf16 mismatch vs reference"

    # --- full block_size sequence, exercises BB > 1 batching: B=4, T=128 ---
    B2, T2 = 4, BLOCK_SIZE
    x2 = jax.random.normal(kx2, (B2, T2, N_EMBD), dtype=jnp.float32)
    ref2 = reference_forward(x2, w_key, w_query, w_value)

    w_qkv = make_qkv_weight(w_key, w_query, w_value)   # precompute once, reuse
    out2 = head_forward_fused(x2, w_qkv)
    jax.block_until_ready(out2)
    assert out2.shape == (B2, T2, HEAD_SIZE)
    assert jnp.allclose(out2, ref2, atol=3e-2, rtol=3e-2), "T=128 mismatch vs reference"

    print("KERNEL_OK")
</pallas_src>

<mosaic_0001>
module attributes {stable_mosaic.version = 11 : i64} {
  func.func @head_kernel(%arg0: i32, %arg1: memref<1x16x384xf32, #tpu.memory_space<vmem>>, %arg2: memref<384x192xf32, #tpu.memory_space<vmem>>, %arg3: memref<1x16x64xf32, #tpu.memory_space<vmem>>) attributes {dimension_semantics = [#tpu.dimension_semantics<parallel>], iteration_bounds = array<i64: 2>, scalar_prefetch = 0 : i64, scratch_operands = 0 : i64, tpu.core_type = #tpu.core_type<tc>, window_params = [{transform_indices = @transform_0, window_bounds = array<i64: 1, 16, 384>}, {pipeline_mode = #tpu.pipeline_mode<synchronous>, transform_indices = @transform_1, window_bounds = array<i64: 384, 192>}, {transform_indices = @transform_2, window_bounds = array<i64: 1, 16, 64>}]} {
    %c0 = arith.constant 0 : index
    %c0_0 = arith.constant 0 : index
    %c0_1 = arith.constant 0 : index
    %0 = vector.load %arg1[%c0, %c0_0, %c0_1] : memref<1x16x384xf32, #tpu.memory_space<vmem>>, vector<1x16x384xf32>
    %1 = vector.shape_cast %0 : vector<1x16x384xf32> to vector<16x384xf32>
    %c0_2 = arith.constant 0 : index
    %c0_3 = arith.constant 0 : index
    %2 = vector.load %arg2[%c0_2, %c0_3] : memref<384x192xf32, #tpu.memory_space<vmem>>, vector<384x192xf32>
    %cst = arith.constant dense<0.000000e+00> : vector<16x192xf32>
    %3 = tpu.matmul %1, %2, %cst {dimension_numbers = #tpu.dot_dimension_numbers<[1], [0], [0], [1], [0, 0, 1, 1], [], []>} : vector<16x384xf32>, vector<384x192xf32>, vector<16x192xf32> -> vector<16x192xf32>
    %4 = vector.shape_cast %3 : vector<16x192xf32> to vector<1x16x192xf32>
    %5 = vector.extract_strided_slice %4 {offsets = [0, 0, 0], sizes = [1, 16, 64], strides = [1, 1, 1]} : vector<1x16x192xf32> to vector<1x16x64xf32>
    %6 = vector.extract_strided_slice %4 {offsets = [0, 0, 64], sizes = [1, 16, 64], strides = [1, 1, 1]} : vector<1x16x192xf32> to vector<1x16x64xf32>
    %7 = vector.extract_strided_slice %4 {offsets = [0, 0, 128], sizes = [1, 16, 64], strides = [1, 1, 1]} : vector<1x16x192xf32> to vector<1x16x64xf32>
    %cst_4 = arith.constant dense<0.000000e+00> : vector<1x16x16xf32>
    %8 = tpu.matmul %5, %6, %cst_4 {dimension_numbers = #tpu.dot_dimension_numbers<[2], [2], [1], [1], [0, 0, 0, 1, 1, 1], [0], [0]>} : vector<1x16x64xf32>, vector<1x16x64xf32>, vector<1x16x16xf32> -> vector<1x16x16xf32>
    %9 = tpu.iota {dimensions = array<i32: 0>} : vector<16x16xi32>
    %10 = tpu.iota {dimensions = array<i32: 1>} : vector<16x16xi32>
    %11 = arith.cmpi sle, %10, %9 : vector<16x16xi32>
    %12 = vector.shape_cast %11 : vector<16x16xi1> to vector<1x16x16xi1>
    %cst_5 = arith.constant 0xFF800000 : f32
    %13 = vector.broadcast %cst_5 : f32 to vector<1x16x16xf32>
    %14 = arith.select %12, %8, %13 : vector<1x16x16xi1>, vector<1x16x16xf32>
    %cst_6 = arith.constant dense<0xFF800000> : vector<1x16xf32>
    %15 = vector.multi_reduction <maximumf>, %14, %cst_6 [2] : vector<1x16x16xf32> to vector<1x16xf32>
    %16 = vector.shape_cast %15 : vector<1x16xf32> to vector<1x16x1xf32>
    %17 = vector.broadcast %16 : vector<1x16x1xf32> to vector<1x16x16xf32>
    %18 = arith.subf %14, %17 : vector<1x16x16xf32>
    %19 = math.exp %18 : vector<1x16x16xf32>
    %cst_7 = arith.constant dense<0.000000e+00> : vector<1x16xf32>
    %20 = vector.multi_reduction <add>, %19, %cst_7 [2] : vector<1x16x16xf32> to vector<1x16xf32>
    %21 = vector.shape_cast %20 : vector<1x16xf32> to vector<1x16x1xf32>
    %22 = tpu.reciprocal %21 : vector<1x16x1xf32> -> vector<1x16x1xf32>
    %23 = vector.broadcast %22 : vector<1x16x1xf32> to vector<1x16x16xf32>
    %24 = arith.mulf %19, %23 : vector<1x16x16xf32>
    %cst_8 = arith.constant dense<0.000000e+00> : vector<1x16x64xf32>
    %25 = tpu.matmul %24, %7, %cst_8 {dimension_numbers = #tpu.dot_dimension_numbers<[2], [1], [1], [2], [0, 0, 0, 1, 1, 2], [0], [0]>} : vector<1x16x16xf32>, vector<1x16x64xf32>, vector<1x16x64xf32> -> vector<1x16x64xf32>
    %c0_9 = arith.constant 0 : index
    %c0_10 = arith.constant 0 : index
    %c0_11 = arith.constant 0 : index
    %26 = vector.load %arg3[%c0_9, %c0_10, %c0_11] : memref<1x16x64xf32, #tpu.memory_space<vmem>>, vector<1x16x64xf32>
    tpu.vector_store %arg3[%c0_9, %c0_10, %c0_11], %25 {strides = array<i32>} : memref<1x16x64xf32, #tpu.memory_space<vmem>>, vector<1x16x64xf32>,
    return
  }
  func.func @transform_0(%arg0: i32) -> (i32, i32, i32) {
    %c0_i32 = arith.constant 0 : i32
    %c0_i32_0 = arith.constant 0 : i32
    %c0_i32_1 = arith.constant 0 : i32
    return %arg0, %c0_i32, %c0_i32_0 : i32, i32, i32
  }
  func.func @transform_1(%arg0: i32) -> (i32, i32) {
    %c0_i32 = arith.constant 0 : i32
    %c0_i32_0 = arith.constant 0 : i32
    %c0_i32_1 = arith.constant 0 : i32
    return %c0_i32, %c0_i32_0 : i32, i32
  }
  func.func @transform_2(%arg0: i32) -> (i32, i32, i32) {
    %c0_i32 = arith.constant 0 : i32
    %c0_i32_0 = arith.constant 0 : i32
    %c0_i32_1 = arith.constant 0 : i32
    return %arg0, %c0_i32, %c0_i32_0 : i32, i32, i32
  }
}

</mosaic_0001>

<llo_original>
// kernel: tpu_custom_call.1
$region0: #{tpu_custom_call.1}
  #allocation0 [shape = 'u32[]', space=smem, size = 0x4, offset = 0x4, fixed_abs, tag = 'smem constant byte address 0x4 - core index']
  #allocation1 [shape = 'u32[144,128]{1,0:T(1,128)}', space=vmem, size = 0x12000, scoped, tag = 'internal scratch']
  %s0 = inlined_call_operand.vmem [shape: f32[2,16,384], index: 0, kind: input, shape index: {}]
  %s1 = inlined_call_operand.vmem [shape: f32[384,192], index: 1, kind: input, shape index: {}]
  %s2 = inlined_call_operand.hbm [shape: f32[2,16,64], index: 2, kind: output, shape index: {}]
  %s3 = sld [smem:[#allocation0]]
  $region41: #{tpu_custom_call.1} parent=0
    _
  %s5 = ssub.s32 1, %s3
  %s6 = scalar_select 0, %s5, %s3
  $region1: #{tpu_custom_call.1} parent=0
    #allocation2 [shape = 'u8[16384]{0}', space=vmem, size = 0x4000, scoped, tag = 'output window, operand 0']
    #allocation3 [shape = 's32[2]{0}', space=sflag, size = 0x8, scoped, tag = 'scoped memory for tpu_custom_call.1']
    %7 = vsyncpa [#allocation3], 0
    %s8 = scalar_lea.sflag [#allocation3], 1
    %9 = vsyncpa %s8, 0
    loop: start=0, step=1, limit=4
    $region2: #{tpu_custom_call.1} parent=1 // loop_pre_header
      _
    $region3: #{tpu_custom_call.1} parent=1 // loop_header
      %s11 = sphi 0, %s15
      %p12 = scmp.ge.s32.totalorder %s11, 4
      %s21 = sphi 0, %s23
      %s24 = sphi 0, %s21
      %s25 = sphi 0, %s24
      %s41 = sphi 0, %s25
      %s45 = sphi 0, %s45
      %s47 = sphi 0, %s45
      %s48 = sphi 0, %s47
      %s62 = sphi 0, %s48
      %s68 = sphi 0, %s70
      %s71 = sphi 0, %s68
      %s72 = sphi 0, %s71
      %s88 = sphi 0, %s72
    $region4: #{tpu_custom_call.1} parent=1 // loop_header_branch
      %14 = sbr.rel (%p12) target = $region8
    $region5: #{tpu_custom_call.1} parent=1 // loop_body
      %s16 = ssub.s32 %s11, 1
      %s17 = ssub.s32 %s11, 2
      %s18 = sadd.s32 %s11, 1
      %s19 = ssub.s32 %s11, %s18
      %p20 = scmp.eq.s32.totalorder %s19, 0
      %s22 = sadd.s32 %s21, 1
      %s23 = scalar_select %p20, %s21, %s22
      %p26 = pneg %p20
      %p27 = scmp.eq.s32.totalorder %s11, 1
      %p28 = por %p26, %p27
      %p29 = scmp.ne.s32.totalorder %s21, %s24
      %p30 = scmp.eq.s32.totalorder %s11, 0
      %p31 = por %p29, %p30
      %p32 = scmp.ne.s32.totalorder %s21, %s24
      %p33 = scmp.eq.s32.totalorder %s16, 1
      %p34 = por %p32, %p33
      %p35 = scmp.ne.s32.totalorder %s24, %s25
      %p36 = scmp.eq.s32.totalorder %s16, 0
      %p37 = por %p35, %p36
      %p38 = scmp.ne.s32.totalorder %s24, %s25
      %p39 = scmp.eq.s32.totalorder %s17, 1
      %p40 = por %p38, %p39
      %p42 = scmp.ne.s32.totalorder %s25, %s41
      %p43 = scmp.eq.s32.totalorder %s17, 0
      %p44 = por %p42, %p43
      %s46 = sadd.s32 %s45, 1
      %p49 = scmp.eq.s32.totalorder %s11, 1
      %p50 = scmp.ne.s32.totalorder %s45, %s47
      %p51 = scmp.eq.s32.totalorder %s11, 0
      %p52 = por %p50, %p51
      %p53 = scmp.ne.s32.totalorder %s45, %s47
      %p54 = scmp.eq.s32.totalorder %s16, 1
      %p55 = por %p53, %p54
      %p56 = scmp.ne.s32.totalorder %s47, %s48
      %p57 = scmp.eq.s32.totalorder %s16, 0
      %p58 = por %p56, %p57
      %p59 = scmp.ne.s32.totalorder %s47, %s48
      %p60 = scmp.eq.s32.totalorder %s17, 1
      %p61 = por %p59, %p60
      %p63 = scmp.ne.s32.totalorder %s48, %s62
      %p64 = scmp.eq.s32.totalorder %s17, 0
      %p65 = por %p63, %p64
      %s66 = ssub.s32 %s11, %s18
      %p67 = scmp.eq.s32.totalorder %s66, 0
      %s69 = sadd.s32 %s68, 1
      %s70 = scalar_select %p67, %s68, %s69
      %p73 = pneg %p67
      %p74 = scmp.eq.s32.totalorder %s11, 1
      %p75 = por %p73, %p74
      %p76 = scmp.ne.s32.totalorder %s68, %s71
      %p77 = scmp.eq.s32.totalorder %s11, 0
      %p78 = por %p76, %p77
      %p79 = scmp.ne.s32.totalorder %s68, %s71
      %p80 = scmp.eq.s32.totalorder %s16, 1
      %p81 = por %p79, %p80
      %p82 = scmp.ne.s32.totalorder %s71, %s72
      %p83 = scmp.eq.s32.totalorder %s16, 0
      %p84 = por %p82, %p83
      %p85 = scmp.ne.s32.totalorder %s71, %s72
      %p86 = scmp.eq.s32.totalorder %s17, 1
      %p87 = por %p85, %p86
      %p89 = scmp.ne.s32.totalorder %s72, %s88
      %p90 = scmp.eq.s32.totalorder %s17, 0
      %p91 = por %p89, %p90
      %p92 = scmp.le.s32.totalorder 1, %s11
      %p93 = scmp.lt.s32.totalorder %s11, 3
      %p94 = pnand %p92, %p93
      %p95 = pneg %p94
      // Predicated region
      $region9: #{tpu_custom_call.1} parent=5 // pred_check
        _
      $region10: #{tpu_custom_call.1} parent=5 // pred_check_branch
        %97 = sbr.rel (%p94) target = $region12
      $region11: #{tpu_custom_call.1} parent=5 // pred_region
        %s98 = ssub.s32 %s11, 1
        // Predicated region
        $region13: #{tpu_custom_call.1} parent=11 // pred_check
          %p99 = pneg %p58
        $region14: #{tpu_custom_call.1} parent=11 // pred_check_branch
          %101 = sbr.rel (%p99) target = $region16
        $region15: #{tpu_custom_call.1} parent=11 // pred_region
          _
        $region16: #{tpu_custom_call.1} parent=11 // pred_fallthru
          _
      $region12: #{tpu_custom_call.1} parent=5 // pred_fallthru
        _
      %p102 = scmp.lt.s32.totalorder %s11, 2
      // Predicated region
      $region17: #{tpu_custom_call.1} parent=5 // pred_check
        %p103 = pneg %p102
      $region18: #{tpu_custom_call.1} parent=5 // pred_check_branch
        %105 = sbr.rel (%p103) target = $region20
      $region19: #{tpu_custom_call.1} parent=5 // pred_region
        // Predicated region
        $region21: #{tpu_custom_call.1} parent=19 // pred_check
          %p106 = pneg %p31
        $region22: #{tpu_custom_call.1} parent=19 // pred_check_branch
          %108 = sbr.rel (%p106) target = $region24
        $region23: #{tpu_custom_call.1} parent=19 // pred_region
          %p109 = scmp.lt.s32.totalorder %s11, 1
          %s110 = scalar_select %p109, %s11, 1
          %s111 = smul.addr %s110, 6
          %s112 = smul.addr %s111, 8
          %s113 = scalar_lea.vmem %s0, %s112
        $region24: #{tpu_custom_call.1} parent=19 // pred_fallthru
          _
      $region20: #{tpu_custom_call.1} parent=5 // pred_fallthru
        _
      %p114 = scmp.le.s32.totalorder 1, %s11
      %p115 = scmp.lt.s32.totalorder %s11, 3
      %p116 = pnand %p114, %p115
      %p117 = pneg %p116
      // Predicated region
      $region25: #{tpu_custom_call.1} parent=5 // pred_check
        _
      $region26: #{tpu_custom_call.1} parent=5 // pred_check_branch
        %119 = sbr.rel (%p116) target = $region28
      $region27: #{tpu_custom_call.1} parent=5 // pred_region
        %s120 = ssub.s32 %s11, 1
        %p121 = scmp.lt.s32.totalorder %s16, 1
        %s122 = scalar_select %p121, %s16, 1
        %s123 = smul.addr %s122, 6
        %s124 = smul.addr %s123, 8
        %s125 = scalar_lea.vmem %s0, %s124
        %p126 = pneg %p37
        %p127 = pneg %p34
        %p128 = pneg %p58
        %p129 = pneg %p55
        %p130 = pneg %p84
        %p131 = pneg %p81
        %s132 = sand.u32 %s71, 1
        %s133 = scalar_lea.sflag [#allocation3], %s132
        %s134 = sand.u32 %s71, 1
        %s135 = smul.addr %s134, 16
        %s136 = scalar_lea.vmem [#allocation2], %s135
        %p137 = scmp.lt.s32.totalorder %s16, 1
        %s138 = scalar_select %p137, %s16, 1
        %s139 = smul.addr %s138, 6
        %s140 = smul.addr %s139, 8
        %s141 = scalar_lea.vmem %s0, %s140
        %v142 = vld [vmem:[%s141] sm:$0xff]
        %v143 = vld [vmem:[%s141 + $0x8] sm:$0xff]
        %v144 = vld [vmem:[%s141 + $0x10] sm:$0xff]
        %v145 = vld [vmem:[%s141 + $0x18] sm:$0xff]
        %v146 = vld [vmem:[%s141 + $0x20] sm:$0xff]
        %v147 = vld [vmem:[%s141 + $0x28] sm:$0xff]
        %v148 = vld [vmem:[%s1] sm:$0xff]
        %v149 = vld [vmem:[%s1 + $0x8] sm:$0xff]
        %v150 = vld [vmem:[%s1 + $0x10] sm:$0xff]
        %v151 = vld [vmem:[%s1 + $0x18] sm:$0xff]
        %v152 = vld [vmem:[%s1 + $0x20] sm:$0xff]
        %v153 = vld [vmem:[%s1 + $0x28] sm:$0xff]
        %v154 = vld [vmem:[%s1 + $0x30] sm:$0xff]
        %v155 = vld [vmem:[%s1 + $0x38] sm:$0xff]
        %v156 = vld [vmem:[%s1 + $0x40] sm:$0xff]
        %v157 = vld [vmem:[%s1 + $0x48] sm:$0xff]
        %v158 = vld [vmem:[%s1 + $0x50] sm:$0xff]
        %v159 = vld [vmem:[%s1 + $0x58] sm:$0xff]
        %v160 = vld [vmem:[%s1 + $0x60] sm:$0xff]
        %v161 = vld [vmem:[%s1 + $0x68] sm:$0xff]
        %v162 = vld [vmem:[%s1 + $0x70] sm:$0xff]
        %v163 = vld [vmem:[%s1 + $0x78] sm:$0xff]
        %v164 = vld [vmem:[%s1 + $0x80] sm:$0xff]
        %v165 = vld [vmem:[%s1 + $0x88] sm:$0xff]
        %v166 = vld [vmem:[%s1 + $0x90] sm:$0xff]
        %v167 = vld [vmem:[%s1 + $0x98] sm:$0xff]
        %v168 = vld [vmem:[%s1 + $0xa0] sm:$0xff]
        %v169 = vld [vmem:[%s1 + $0xa8] sm:$0xff]
        %v170 = vld [vmem:[%s1 + $0xb0] sm:$0xff]
        %v171 = vld [vmem:[%s1 + $0xb8] sm:$0xff]
        %v172 = vld [vmem:[%s1 + $0xc0] sm:$0xff]
        %v173 = vld [vmem:[%s1 + $0xc8] sm:$0xff]
        %v174 = vld [vmem:[%s1 + $0xd0] sm:$0xff]
        %v175 = vld [vmem:[%s1 + $0xd8] sm:$0xff]
        %v176 = vld [vmem:[%s1 + $0xe0] sm:$0xff]
        %v177 = vld [vmem:[%s1 + $0xe8] sm:$0xff]
        %v178 = vld [vmem:[%s1 + $0xf0] sm:$0xff]
        %v179 = vld [vmem:[%s1 + $0xf8] sm:$0xff]
        %v180 = vld [vmem:[%s1 + $0x100] sm:$0xff]
        %v181 = vld [vmem:[%s1 + $0x108] sm:$0xff]
        %v182 = vld [vmem:[%s1 + $0x110] sm:$0xff]
        %v183 = vld [vmem:[%s1 + $0x118] sm:$0xff]
        %v184 = vld [vmem:[%s1 + $0x120] sm:$0xff]
        %v185 = vld [vmem:[%s1 + $0x128] sm:$0xff]
        %v186 = vld [vmem:[%s1 + $0x130] sm:$0xff]
        %v187 = vld [vmem:[%s1 + $0x138] sm:$0xff]
        %v188 = vld [vmem:[%s1 + $0x140] sm:$0xff]
        %v189 = vld [vmem:[%s1 + $0x148] sm:$0xff]
        %v190 = vld [vmem:[%s1 + $0x150] sm:$0xff]
        %v191 = vld [vmem:[%s1 + $0x158] sm:$0xff]
        %v192 = vld [vmem:[%s1 + $0x160] sm:$0xff]
        %v193 = vld [vmem:[%s1 + $0x168] sm:$0xff]
        %v194 = vld [vmem:[%s1 + $0x170] sm:$0xff]
        %v195 = vld [vmem:[%s1 + $0x178] sm:$0xff]
        %v196 = vld [vmem:[%s1 + $0x180] sm:$0xff]
        %v197 = vld [vmem:[%s1 + $0x188] sm:$0xff]
        %v198 = vld [vmem:[%s1 + $0x190] sm:$0xff]
        %v199 = vld [vmem:[%s1 + $0x198] sm:$0xff]
        %v200 = vld [vmem:[%s1 + $0x1a0] sm:$0xff]
        %v201 = vld [vmem:[%s1 + $0x1a8] sm:$0xff]
        %v202 = vld [vmem:[%s1 + $0x1b0] sm:$0xff]
        %v203 = vld [vmem:[%s1 + $0x1b8] sm:$0xff]
        %v204 = vld [vmem:[%s1 + $0x1c0] sm:$0xff]
        %v205 = vld [vmem:[%s1 + $0x1c8] sm:$0xff]
        %v206 = vld [vmem:[%s1 + $0x1d0] sm:$0xff]
        %v207 = vld [vmem:[%s1 + $0x1d8] sm:$0xff]
        %v208 = vld [vmem:[%s1 + $0x1e0] sm:$0xff]
        %v209 = vld [vmem:[%s1 + $0x1e8] sm:$0xff]
        %v210 = vld [vmem:[%s1 + $0x1f0] sm:$0xff]
        %v211 = vld [vmem:[%s1 + $0x1f8] sm:$0xff]
        %v212 = vld [vmem:[%s1 + $0x200] sm:$0xff]
        %v213 = vld [vmem:[%s1 + $0x208] sm:$0xff]
        %v214 = vld [vmem:[%s1 + $0x210] sm:$0xff]
        %v215 = vld [vmem:[%s1 + $0x218] sm:$0xff]
        %v216 = vld [vmem:[%s1 + $0x220] sm:$0xff]
        %v217 = vld [vmem:[%s1 + $0x228] sm:$0xff]
        %v218 = vld [vmem:[%s1 + $0x230] sm:$0xff]
        %v219 = vld [vmem:[%s1 + $0x238] sm:$0xff]
        %v220 = vld [vmem:[%s1 + $0x240] sm:$0xff]
        %v221 = vld [vmem:[%s1 + $0x248] sm:$0xff]
        %v222 = vld [vmem:[%s1 + $0x250] sm:$0xff]
        %v223 = vld [vmem:[%s1 + $0x258] sm:$0xff]
        %v224 = vld [vmem:[%s1 + $0x260] sm:$0xff]
        %v225 = vld [vmem:[%s1 + $0x268] sm:$0xff]
        %v226 = vld [vmem:[%s1 + $0x270] sm:$0xff]
        %v227 = vld [vmem:[%s1 + $0x278] sm:$0xff]
        %v228 = vld [vmem:[%s1 + $0x280] sm:$0xff]
        %v229 = vld [vmem:[%s1 + $0x288] sm:$0xff]
        %v230 = vld [vmem:[%s1 + $0x290] sm:$0xff]
        %v231 = vld [vmem:[%s1 + $0x298] sm:$0xff]
        %v232 = vld [vmem:[%s1 + $0x2a0] sm:$0xff]
        %v233 = vld [vmem:[%s1 + $0x2a8] sm:$0xff]
        %v234 = vld [vmem:[%s1 + $0x2b0] sm:$0xff]
        %v235 = vld [vmem:[%s1 + $0x2b8] sm:$0xff]
        %v236 = vld [vmem:[%s1 + $0x2c0] sm:$0xff]
        %v237 = vld [vmem:[%s1 + $0x2c8] sm:$0xff]
        %v238 = vld [vmem:[%s1 + $0x2d0] sm:$0xff]
        %v239 = vld [vmem:[%s1 + $0x2d8] sm:$0xff]
        %v240 = vld [vmem:[%s1 + $0x2e0] sm:$0xff]
        %v241 = vld [vmem:[%s1 + $0x2e8] sm:$0xff]
        %v242 = vld [vmem:[%s1 + $0x2f0] sm:$0xff]
        %v243 = vld [vmem:[%s1 + $0x2f8] sm:$0xff]
        %244 = vmatprep.subr.mxu0 %v149
        %245 = vmatpush1.msra.mxu0 %v148
        %246 = vmatprep.subr.mxu0 %v151
        %247 = vmatpush1.msra.mxu0 %v150
        %248 = vmatprep.subr.mxu0 %v153
        %249 = vmatpush1.msra.mxu0 %v152
        %250 = vmatprep.subr.mxu0 %v155
        %251 = vmatpush1.msra.mxu0 %v154
        %252 = vmatprep.subr.mxu0 %v157
        %253 = vmatpush1.msra.mxu0 %v156
        %254 = vmatprep.subr.mxu0 %v159
        %255 = vmatpush1.msra.mxu0 %v158
        %256 = vmatprep.subr.mxu0 %v161
        %257 = vmatpush1.msra.mxu0 %v160
        %258 = vmatprep.subr.mxu0 %v163
        %259 = vmatpush1.msra.mxu0 %v162
        %260 = vmatprep.subr.mxu0 %v165
        %261 = vmatpush1.msra.mxu0 %v164
        %262 = vmatprep.subr.mxu0 %v167
        %263 = vmatpush1.msra.mxu0 %v166
        %264 = vmatprep.subr.mxu0 %v169
        %265 = vmatpush1.msra.mxu0 %v168
        %266 = vmatprep.subr.mxu0 %v171
        %267 = vmatpush1.msra.mxu0 %v170
        %268 = vmatprep.subr.mxu0 %v173
        %269 = vmatpush1.msra.mxu0 %v172
        %270 = vmatprep.subr.mxu0 %v175
        %271 = vmatpush1.msra.mxu0 %v174
        %272 = vmatprep.subr.mxu0 %v177
        %273 = vmatpush1.msra.mxu0 %v176
        %274 = vmatprep.subr.mxu0 %v179
        %275 = vmatpush1.msra.mxu0 %v178
        %276 = vmatprep.subr.mxu0 %v181
        %277 = vmatpush1.msra.mxu0 %v180
        %278 = vmatprep.subr.mxu0 %v183
        %279 = vmatpush1.msra.mxu0 %v182
        %280 = vmatprep.subr.mxu0 %v185
        %281 = vmatpush1.msra.mxu0 %v184
        %282 = vmatprep.subr.mxu0 %v187
        %283 = vmatpush1.msra.mxu0 %v186
        %284 = vmatprep.subr.mxu0 %v189
        %285 = vmatpush1.msra.mxu0 %v188
        %286 = vmatprep.subr.mxu0 %v191
        %287 = vmatpush1.msra.mxu0 %v190
        %288 = vmatprep.subr.mxu0 %v193
        %289 = vmatpush1.msra.mxu0 %v192
        %290 = vmatprep.subr.mxu0 %v195
        %291 = vmatpush1.msra.mxu0 %v194
        %292 = vmatprep.subr.mxu0 %v197
        %293 = vmatpush1.msra.mxu0 %v196
        %294 = vmatprep.subr.mxu0 %v199
        %295 = vmatpush1.msra.mxu0 %v198
        %296 = vmatprep.subr.mxu0 %v201
        %297 = vmatpush1.msra.mxu0 %v200
        %298 = vmatprep.subr.mxu0 %v203
        %299 = vmatpush1.msra.mxu0 %v202
        %300 = vmatprep.subr.mxu0 %v205
        %301 = vmatpush1.msra.mxu0 %v204
        %302 = vmatprep.subr.mxu0 %v207
        %303 = vmatpush1.msra.mxu0 %v206
        %304 = vmatprep.subr.mxu0 %v209
        %305 = vmatpush1.msra.mxu0 %v208
        %306 = vmatprep.subr.mxu0 %v211
        %307 = vmatpush1.msra.mxu0 %v210
        %308 = vmatprep.mubr.f32.mxu0 %v143
        %309 = vmatmul.mubr.f32.gmra.mrb[0].mxu0 %v142
        %v310 = vpop.f32.mrb[0].mxu0
        %v311 = vadd.f32 0.0, %v310
        %v312 = vpop.f32.mrb[0].mxu0
        %v313 = vadd.f32 0.0, %v312
        %314 = vmatprep.mubr.f32.mxu0 %v146
        %315 = vmatmul.mubr.f32.gmra.mrb[0].mxu0 %v145
        %v316 = vpop.f32.mrb[0].mxu0
        %v317 = vadd.f32 0.0, %v316
        %v318 = vpop.f32.mrb[0].mxu0
        %v319 = vadd.f32 0.0, %v318
        %320 = vdwg.mxu0
        %321 = vmatprep.subr.mxu0 %v213
        %322 = vmatpush1.msra.mxu0 %v212
        %323 = vmatprep.subr.mxu0 %v215
        %324 = vmatpush1.msra.mxu0 %v214
        %325 = vmatprep.subr.mxu0 %v217
        %326 = vmatpush1.msra.mxu0 %v216
        %327 = vmatprep.subr.mxu0 %v219
        %328 = vmatpush1.msra.mxu0 %v218
        %329 = vmatprep.subr.mxu0 %v221
        %330 = vmatpush1.msra.mxu0 %v220
        %331 = vmatprep.subr.mxu0 %v223
        %332 = vmatpush1.msra.mxu0 %v222
        %333 = vmatprep.subr.mxu0 %v225
        %334 = vmatpush1.msra.mxu0 %v224
        %335 = vmatprep.subr.mxu0 %v227
        %336 = vmatpush1.msra.mxu0 %v226
        %337 = vmatprep.subr.mxu0 %v229
        %338 = vmatpush1.msra.mxu0 %v228
        %339 = vmatprep.subr.mxu0 %v231
        %340 = vmatpush1.msra.mxu0 %v230
        %341 = vmatprep.subr.mxu0 %v233
        %342 = vmatpush1.msra.mxu0 %v232
        %343 = vmatprep.subr.mxu0 %v235
        %344 = vmatpush1.msra.mxu0 %v234
        %345 = vmatprep.subr.mxu0 %v237
        %346 = vmatpush1.msra.mxu0 %v236
        %347 = vmatprep.subr.mxu0 %v239
        %348 = vmatpush1.msra.mxu0 %v238
        %349 = vmatprep.subr.mxu0 %v241
        %350 = vmatpush1.msra.mxu0 %v240
        %351 = vmatprep.subr.mxu0 %v243
        %352 = vmatpush1.msra.mxu0 %v242
        %353 = vmatprep.subr.mxu0 0.0
        %354 = vmatpush1.msra.mxu0 0.0
        %355 = vmatprep.subr.mxu0 0.0
        %356 = vmatpush1.msra.mxu0 0.0
        %357 = vmatprep.subr.mxu0 0.0
        %358 = vmatpush1.msra.mxu0 0.0
        %359 = vmatprep.subr.mxu0 0.0
        %360 = vmatpush1.msra.mxu0 0.0
        %361 = vmatprep.subr.mxu0 0.0
        %362 = vmatpush1.msra.mxu0 0.0
        %363 = vmatprep.subr.mxu0 0.0
        %364 = vmatpush1.msra.mxu0 0.0
        %365 = vmatprep.subr.mxu0 0.0
        %366 = vmatpush1.msra.mxu0 0.0
        %367 = vmatprep.subr.mxu0 0.0
        %368 = vmatpush1.msra.mxu0 0.0
        %369 = vmatprep.subr.mxu0 0.0
        %370 = vmatpush1.msra.mxu0 0.0
        %371 = vmatprep.subr.mxu0 0.0
        %372 = vmatpush1.msra.mxu0 0.0
        %373 = vmatprep.subr.mxu0 0.0
        %374 = vmatpush1.msra.mxu0 0.0
        %375 = vmatprep.subr.mxu0 0.0
        %376 = vmatpush1.msra.mxu0 0.0
        %377 = vmatprep.subr.mxu0 0.0
        %378 = vmatpush1.msra.mxu0 0.0
        %379 = vmatprep.subr.mxu0 0.0
        %380 = vmatpush1.msra.mxu0 0.0
        %381 = vmatprep.subr.mxu0 0.0
        %382 = vmatpush1.msra.mxu0 0.0
        %383 = vmatprep.subr.mxu0 0.0
        %384 = vmatpush1.msra.mxu0 0.0
        %385 = vmatprep.mubr.f32.mxu0 0.0
        %386 = vmatmul.mubr.f32.gmra.mrb[0].mxu0 %v144
        %v387 = vpop.f32.mrb[0].mxu0
        %v388 = vadd.f32 %v311, %v387
        %v389 = vpop.f32.mrb[0].mxu0
        %v390 = vadd.f32 %v313, %v389
        %391 = vmatprep.mubr.f32.mxu0 0.0
        %392 = vmatmul.mubr.f32.gmra.mrb[0].mxu0 %v147
        %v393 = vpop.f32.mrb[0].mxu0
        %v394 = vadd.f32 %v317, %v393
        %v395 = vpop.f32.mrb[0].mxu0
        %v396 = vadd.f32 %v319, %v395
        %397 = vdwg.mxu0
        %400 = vrot.lane.b32.xlu0 %v388, 64
        %v401 = vpop.permute.xlu0 %400
        %402 = vrot.lane.b32.xlu0 %v394, 64
        %v403 = vpop.permute.xlu0 %402
        %vm404 = vcmask 523264
        %v405 = vsel %vm404, %v388, 0
        %v407 = vsel %vm404, %v394, 0
        %v409 = vsel %vm404, %v401, 0
        %v411 = vsel %vm404, %v403, 0
        %413 = vmatprep.subr.mxu0 0.0
        %414 = vmatpush1.xpose.msra.mxu0 %v409
        %415 = vmatprep.subr.mxu0 0.0
        %416 = vmatpush1.xpose.msra.mxu0 %v411
        %417 = vmatprep.subr.mxu0 0.0
        %418 = vmatpush1.xpose.msra.mxu0 0.0
        %419 = vmatprep.subr.mxu0 0.0
        %420 = vmatpush1.xpose.msra.mxu0 0.0
        %421 = vmatprep.subr.mxu0 0.0
        %422 = vmatpush1.xpose.msra.mxu0 0.0
        %423 = vmatprep.subr.mxu0 0.0
        %424 = vmatpush1.xpose.msra.mxu0 0.0
        %425 = vmatprep.subr.mxu0 0.0
        %426 = vmatpush1.xpose.msra.mxu0 0.0
        %427 = vmatprep.subr.mxu0 0.0
        %428 = vmatpush1.xpose.msra.mxu0 0.0
        %429 = vmatprep.subr.mxu0 0.0
        %430 = vmatpush1.xpose.msra.mxu0 0.0
        %431 = vmatprep.subr.mxu0 0.0
        %432 = vmatpush1.xpose.msra.mxu0 0.0
        %433 = vmatprep.subr.mxu0 0.0
        %434 = vmatpush1.xpose.msra.mxu0 0.0
        %435 = vmatprep.subr.mxu0 0.0
        %436 = vmatpush1.xpose.msra.mxu0 0.0
        %437 = vmatprep.subr.mxu0 0.0
        %438 = vmatpush1.xpose.msra.mxu0 0.0
        %439 = vmatprep.subr.mxu0 0.0
        %440 = vmatpush1.xpose.msra.mxu0 0.0
        %441 = vmatprep.subr.mxu0 0.0
        %442 = vmatpush1.xpose.msra.mxu0 0.0
        %443 = vmatprep.subr.mxu0 0.0
        %444 = vmatpush1.xpose.msra.mxu0 0.0
        %445 = vmatprep.subr.mxu0 0.0
        %446 = vmatpush1.xpose.msra.mxu0 0.0
        %447 = vmatprep.subr.mxu0 0.0
        %448 = vmatpush1.xpose.msra.mxu0 0.0
        %449 = vmatprep.subr.mxu0 0.0
        %450 = vmatpush1.xpose.msra.mxu0 0.0
        %451 = vmatprep.subr.mxu0 0.0
        %452 = vmatpush1.xpose.msra.mxu0 0.0
        %453 = vmatprep.subr.mxu0 0.0
        %454 = vmatpush1.xpose.msra.mxu0 0.0
        %455 = vmatprep.subr.mxu0 0.0
        %456 = vmatpush1.xpose.msra.mxu0 0.0
        %457 = vmatprep.subr.mxu0 0.0
        %458 = vmatpush1.xpose.msra.mxu0 0.0
        %459 = vmatprep.subr.mxu0 0.0
        %460 = vmatpush1.xpose.msra.mxu0 0.0
        %461 = vmatprep.subr.mxu0 0.0
        %462 = vmatpush1.xpose.msra.mxu0 0.0
        %463 = vmatprep.subr.mxu0 0.0
        %464 = vmatpush1.xpose.msra.mxu0 0.0
        %465 = vmatprep.subr.mxu0 0.0
        %466 = vmatpush1.xpose.msra.mxu0 0.0
        %467 = vmatprep.subr.mxu0 0.0
        %468 = vmatpush1.xpose.msra.mxu0 0.0
        %469 = vmatprep.subr.mxu0 0.0
        %470 = vmatpush1.xpose.msra.mxu0 0.0
        %471 = vmatprep.subr.mxu0 0.0
        %472 = vmatpush1.xpose.msra.mxu0 0.0
        %473 = vmatprep.subr.mxu0 0.0
        %474 = vmatpush1.xpose.msra.mxu0 0.0
        %475 = vmatprep.subr.mxu0 0.0
        %476 = vmatpush1.xpose.msra.mxu0 0.0
        %477 = vmatprep.mubr.f32.mxu0 0.0
        %478 = vmatmul.mubr.f32.gmra.mrb[0].mxu0 %v405
        %v479 = vpop.f32.mrb[0].mxu0
        %v480 = vadd.f32 0.0, %v479
        %v481 = vpop.f32.mrb[0].mxu0
        %482 = vmatprep.mubr.f32.mxu0 0.0
        %483 = vmatmul.mubr.f32.gmra.mrb[0].mxu0 %v407
        %v484 = vpop.f32.mrb[0].mxu0
        %v485 = vadd.f32 0.0, %v484
        %v486 = vpop.f32.mrb[0].mxu0
        %487 = vdwg.mxu0
        %v488 = vlaneseq
        %v489 = vshrl.u32 %v488, 7
        %v490 = vadd.s32 %v489, 8
        %v491 = vlaneseq
        %v492 = vand.u32 %v491, 127
        %vm493 = vcmp.le.s32.totalorder %v492, %v489
        %vm494 = vcmp.le.s32.totalorder %v492, %v490
        %v495 = vsel %vm493, %v480, -inf
        %v496 = vsel %vm494, %v485, -inf
        %vm497 = vcmask 130048
        %v498 = vsel %vm497, %v495, -inf
        %499 = vmax.xlane.f32.xlu0 %v498
        %v500 = vpop.xlane.xlu0 %499
        %v501 = vsel %vm497, %v496, -inf
        %502 = vmax.xlane.f32.xlu0 %v501
        %v503 = vpop.xlane.xlu0 %502
        %v504 = vsub.f32 %v495, %v500
        %v505 = vsub.f32 %v496, %v503
        %v506 = vmul.f32 %v504, 1.442695
        %v507 = vpow.pop %v506
        %v508 = vmul.f32 %v505, 1.442695
        %v509 = vpow.pop %v508
        %v510 = vsel %vm497, %v507, 0.0
        %511 = vadd.xlane.f32.xlu0 %v510
        %v512 = vpop.xlane.xlu0 %511
        %v513 = vsel %vm497, %v509, 0.0
        %514 = vadd.xlane.f32.xlu0 %v513
        %v515 = vpop.xlane.xlu0 %514
        %v516 = vrcp.pop %v512
        %v517 = vrcp.pop %v515
        %v518 = vmul.f32 %v507, %v516
        %v519 = vmul.f32 %v509, %v517
        %v521 = vsel %vm497, %v518, 0
        %v524 = vsel %vm497, %v519, 0
        %526 = vmatprep.subr.mxu0 0.0
        %527 = vmatpush1.msra.mxu0 %v390
        %528 = vmatprep.subr.mxu0 0.0
        %529 = vmatpush1.msra.mxu0 %v396
        %530 = vmatprep.subr.mxu0 0.0
        %531 = vmatpush1.msra.mxu0 0.0
        %532 = vmatprep.subr.mxu0 0.0
        %533 = vmatpush1.msra.mxu0 0.0
        %534 = vmatprep.subr.mxu0 0.0
        %535 = vmatpush1.msra.mxu0 0.0
        %536 = vmatprep.subr.mxu0 0.0
        %537 = vmatpush1.msra.mxu0 0.0
        %538 = vmatprep.subr.mxu0 0.0
        %539 = vmatpush1.msra.mxu0 0.0
        %540 = vmatprep.subr.mxu0 0.0
        %541 = vmatpush1.msra.mxu0 0.0
        %542 = vmatprep.subr.mxu0 0.0
        %543 = vmatpush1.msra.mxu0 0.0
        %544 = vmatprep.subr.mxu0 0.0
        %545 = vmatpush1.msra.mxu0 0.0
        %546 = vmatprep.subr.mxu0 0.0
        %547 = vmatpush1.msra.mxu0 0.0
        %548 = vmatprep.subr.mxu0 0.0
        %549 = vmatpush1.msra.mxu0 0.0
        %550 = vmatprep.subr.mxu0 0.0
        %551 = vmatpush1.msra.mxu0 0.0
        %552 = vmatprep.subr.mxu0 0.0
        %553 = vmatpush1.msra.mxu0 0.0
        %554 = vmatprep.subr.mxu0 0.0
        %555 = vmatpush1.msra.mxu0 0.0
        %556 = vmatprep.subr.mxu0 0.0
        %557 = vmatpush1.msra.mxu0 0.0
        %558 = vmatprep.subr.mxu0 0.0
        %559 = vmatpush1.msra.mxu0 0.0
        %560 = vmatprep.subr.mxu0 0.0
        %561 = vmatpush1.msra.mxu0 0.0
        %562 = vmatprep.subr.mxu0 0.0
        %563 = vmatpush1.msra.mxu0 0.0
        %564 = vmatprep.subr.mxu0 0.0
        %565 = vmatpush1.msra.mxu0 0.0
        %566 = vmatprep.subr.mxu0 0.0
        %567 = vmatpush1.msra.mxu0 0.0
        %568 = vmatprep.subr.mxu0 0.0
        %569 = vmatpush1.msra.mxu0 0.0
        %570 = vmatprep.subr.mxu0 0.0
        %571 = vmatpush1.msra.mxu0 0.0
        %572 = vmatprep.subr.mxu0 0.0
        %573 = vmatpush1.msra.mxu0 0.0
        %574 = vmatprep.subr.mxu0 0.0
        %575 = vmatpush1.msra.mxu0 0.0
        %576 = vmatprep.subr.mxu0 0.0
        %577 = vmatpush1.msra.mxu0 0.0
        %578 = vmatprep.subr.mxu0 0.0
        %579 = vmatpush1.msra.mxu0 0.0
        %580 = vmatprep.subr.mxu0 0.0
        %581 = vmatpush1.msra.mxu0 0.0
        %582 = vmatprep.subr.mxu0 0.0
        %583 = vmatpush1.msra.mxu0 0.0
        %584 = vmatprep.subr.mxu0 0.0
        %585 = vmatpush1.msra.mxu0 0.0
        %586 = vmatprep.subr.mxu0 0.0
        %587 = vmatpush1.msra.mxu0 0.0
        %588 = vmatprep.subr.mxu0 0.0
        %589 = vmatpush1.msra.mxu0 0.0
        %590 = vmatprep.mubr.f32.mxu0 0.0
        %591 = vmatmul.mubr.f32.gmra.mrb[0].mxu0 %v521
        %v592 = vpop.f32.mrb[0].mxu0
        %v593 = vadd.f32 0.0, %v592
        %v594 = vpop.f32.mrb[0].mxu0
        %595 = vmatprep.mubr.f32.mxu0 0.0
        %596 = vmatmul.mubr.f32.gmra.mrb[0].mxu0 %v524
        %v597 = vpop.f32.mrb[0].mxu0
        %v598 = vadd.f32 0.0, %v597
        %v599 = vpop.f32.mrb[0].mxu0
        %600 = vdwg.mxu0
        %601 = vst.msk [vmem:[%s136] sm:$0xff] %vm404, %v593
        %602 = vst.msk [vmem:[%s136 + $0x8] sm:$0xff] %vm404, %v598
        %s603 = sand.u32 %s71, 1
        %s604 = scalar_lea.sflag [#allocation3], %s603
        %s605 = sand.u32 %s71, 1
        %s606 = smul.addr %s605, 16
        %s607 = scalar_lea.vmem [#allocation2], %s606
        // Predicated region
        $region29: #{tpu_custom_call.1} parent=27 // pred_check
          %p608 = pneg %p81
        $region30: #{tpu_custom_call.1} parent=27 // pred_check_branch
          %610 = sbr.rel (%p608) target = $region32
        $region31: #{tpu_custom_call.1} parent=27 // pred_region
          %s612 = ssub.s32 256, 256
          %613 = vsyncadd %s604, %s612
          %s614 = smul.addr %s16, 2
          %s615 = smul.addr %s614, 128
          %s616 = scalar_lea.hbm %s2, %s615
          %s617 = sshll.u32 %s607, 4
          %s618 = int_to_ptr.vmem [resolvable:$true] %s617
          %623 = dma.vmem_to_hbm [thread:$0]  %s618, 256, %s616, %s604, 128, 128, 8
        $region32: #{tpu_custom_call.1} parent=27 // pred_fallthru
          _
      $region28: #{tpu_custom_call.1} parent=5 // pred_fallthru
        _
      %p624 = scmp.le.s32.totalorder 2, %s11
      // Predicated region
      $region33: #{tpu_custom_call.1} parent=5 // pred_check
        %p625 = pneg %p624
      $region34: #{tpu_custom_call.1} parent=5 // pred_check_branch
        %627 = sbr.rel (%p625) target = $region36
      $region35: #{tpu_custom_call.1} parent=5 // pred_region
        %s628 = ssub.s32 %s11, 2
        // Predicated region
        $region37: #{tpu_custom_call.1} parent=35 // pred_check
          %p629 = pneg %p87
        $region38: #{tpu_custom_call.1} parent=35 // pred_check_branch
          %631 = sbr.rel (%p629) target = $region40
        $region39: #{tpu_custom_call.1} parent=35 // pred_region
          %s632 = sand.u32 %s72, 1
          %s633 = scalar_lea.sflag [#allocation3], %s632
          %s634 = sand.u32 %s72, 1
          %s635 = smul.addr %s634, 16
          %s636 = scalar_lea.vmem [#allocation2], %s635
          %637 = dma.done %s633, 256
        $region40: #{tpu_custom_call.1} parent=35 // pred_fallthru
          _
      $region36: #{tpu_custom_call.1} parent=5 // pred_fallthru
        _
    $region6: #{tpu_custom_call.1} parent=1 // loop_footer
      %s15 = sadd.s32 1, %s11
    $region7: #{tpu_custom_call.1} parent=1 // loop_footer_branch
      %10 = sbr.rel target = $region3
    $region8: #{tpu_custom_call.1} parent=1 // loop_exit
      _
    %638 = vsyncpa [#allocation3], 1
    %s639 = scalar_lea.sflag [#allocation3], 1
    %640 = vsyncpa %s639, 1

</llo_original>
